<compile_context>
chip_gen: v7x
topology: tpu7x:2x2x1
jax: 0.10.0
libtpu: 0.0.40
codegen_flags: <defaults>
</compile_context>

<pallas_src>
import math

import jax
import jax.numpy as jnp
from jax.experimental import pallas as pl
from jax.experimental.pallas import tpu as pltpu


_ACTIVATIONS = {
    "silu": jax.nn.silu,
    "gelu": jax.nn.gelu,
    "relu": jax.nn.relu,
}


# ---------------------------------------------------------------------------
# Tile selection
# ---------------------------------------------------------------------------
def _vmem_capacity_bytes():
    try:
        return int(pltpu.get_tpu_info().vmem_capacity_bytes)
    except Exception:
        return 64 * 1024 * 1024  # conservative fallback (v7x per-core VMEM)


def _ti_candidates(inter):
    """Legal intermediate tiles, descending: `inter` itself (full dim) plus every
    divisor that is a multiple of 256 (MXU width on v6e/v7x) or 128 (lane width)."""
    cands = {inter}
    for g in (256, 128):
        t = (inter // g) * g
        while t >= g:
            if inter % t == 0:
                cands.add(t)
            t -= g
    return sorted(cands, reverse=True)


def _round_down_tile(v):
    for g in (256, 128, 8):
        if v >= g:
            return (v // g) * g
    return 8


def _pick_tm(rows, cap, *, multi_tile_rows=1024):
    """Row tile <= cap.  Prefers MXU-friendly sizes (multiples of 256/128) with no
    padding; for large workloads guarantees >= 2 row tiles (v7x megacore)."""
    cap = max(8, min(int(cap), 2048))
    if rows >= multi_tile_rows:
        half = ((rows // 2 + 127) // 128) * 128
        cap = min(cap, max(256, half))
    cap = _round_down_tile(cap)
    if rows <= cap:
        tm = -(-rows // 8) * 8            # single tile, pad at most 7 rows
        return tm, tm
    for g in (256, 128):                  # largest MXU-friendly divisor: no padding
        t = (cap // g) * g
        while t >= g:
            if rows % t == 0:
                return t, rows
            t -= g
    n_tiles = -(-rows // cap)             # no clean divisor: balanced tiles + pad tail
    per = -(-rows // n_tiles)
    tm = min(cap, -(-per // 64) * 64)
    return tm, tm * (-(-rows // tm))


def _pick_tiles(rows, hidden, inter, x_bytes, w_bytes, o_bytes, o_is_f32, budget):
    """Jointly pick (ti, tm, padded_rows, use_acc) within the VMEM budget."""
    best, best_key = None, None
    for ti in _ti_candidates(inter):
        n_j = inter // ti
        use_acc = (n_j > 1) and (not o_is_f32)
        w_buf = 2 * 3 * hidden * ti * w_bytes              # double-buffered Wg/Wu/Wd blocks
        rem = budget - w_buf
        if rem <= 0:
            continue
        per_row = (hidden * (2 * x_bytes + 2 * o_bytes + 4)  # x/out blocks + f32 contrib
                   + (4 * hidden if use_acc else 0)          # f32 accumulator scratch
                   + 20 * ti)                                # f32 gate/up/h temporaries
        cap = rem // per_row
        if cap < 8:
            continue
        tm, padded = _pick_tm(rows, cap)
        key = (1 if ti == inter else 0, min(tm, 1024), ti)
        if best_key is None or key > best_key:
            best_key, best = key, (ti, tm, padded, use_acc)
        if ti == inter and tm >= min(rows, 512):
            break                                            # weight-resident + healthy row tile
    if best is None:                                         # degenerate fallback
        ti = _ti_candidates(inter)[-1]
        tm = min(-(-rows // 8) * 8, 256)
        best = (ti, tm, tm * (-(-rows // tm)), (inter // ti > 1) and (not o_is_f32))
    return best


# ---------------------------------------------------------------------------
# Kernel
# ---------------------------------------------------------------------------
def _make_kernel(act, use_acc):
    def _contrib(x_ref, wg_ref, wu_ref, wd_ref):
        x = x_ref[...]
        gate = jnp.dot(x, wg_ref[...], preferred_element_type=jnp.float32)
        up = jnp.dot(x, wu_ref[...], preferred_element_type=jnp.float32)
        h = (up * act(gate)).astype(wd_ref.dtype)            # gating in f32, single cast
        return jnp.dot(h, wd_ref[...], preferred_element_type=jnp.float32)

    if use_acc:
        # Multi-step reduction with a narrow output dtype: f32 scratch accumulator.
        def kernel(x_ref, wg_ref, wu_ref, wd_ref, o_ref, acc_ref):
            c = _contrib(x_ref, wg_ref, wu_ref, wd_ref)
            j = pl.program_id(1)

            @pl.when(j == 0)
            def _():
                acc_ref[...] = c                             # write, not zero+add

            @pl.when(j != 0)
            def _():
                acc_ref[...] += c

            @pl.when(j == pl.num_programs(1) - 1)
            def _():
                o_ref[...] = acc_ref[...].astype(o_ref.dtype)
    else:
        # Single reduction step or f32 output: accumulate directly into o_ref.
        def kernel(x_ref, wg_ref, wu_ref, wd_ref, o_ref):
            c = _contrib(x_ref, wg_ref, wu_ref, wd_ref)
            j = pl.program_id(1)

            @pl.when(j == 0)
            def _():
                o_ref[...] = c.astype(o_ref.dtype)

            @pl.when(j != 0)
            def _():
                o_ref[...] += c.astype(o_ref.dtype)

    return kernel


# ---------------------------------------------------------------------------
# Wrapper
# ---------------------------------------------------------------------------
def doge_gate_mlp(hidden_states, w_gate, w_up, w_down, *, act="silu",
                  block_rows=None, block_inter=None):
    """Fused gated MLP: ((x @ Wu) * act(x @ Wg)) @ Wd.

    hidden_states : (..., hidden)
    w_gate, w_up  : (hidden, intermediate)   (nn.Linear weights, pre-transposed)
    w_down        : (intermediate, hidden)
    block_rows / block_inter : optional tile-size overrides (testing / tuning).
    """
    act_fn = _ACTIVATIONS[act]
    orig_shape = hidden_states.shape
    hidden = orig_shape[-1]
    inter = w_gate.shape[1]
    assert w_gate.shape == (hidden, inter)
    assert w_up.shape == (hidden, inter)
    assert w_down.shape == (inter, hidden)

    x2d = hidden_states.reshape(-1, hidden)
    rows = x2d.shape[0]
    o_dtype = hidden_states.dtype
    o_is_f32 = o_dtype == jnp.float32
    x_bytes = jnp.dtype(hidden_states.dtype).itemsize
    w_bytes = jnp.dtype(w_gate.dtype).itemsize
    o_bytes = jnp.dtype(o_dtype).itemsize

    # VMEM limit from the actual part (~96 MiB on 128 MiB v5e/v6e, ~48 MiB on 64 MiB
    # v7x), with headroom left for compiler-internal scratch.
    vmem_limit = int(min(100 * 2**20, max(32 * 2**20, (_vmem_capacity_bytes() * 3) // 4)))
    budget = vmem_limit - 6 * 2**20

    ti, tm, padded_rows, use_acc = _pick_tiles(
        rows, hidden, inter, x_bytes, w_bytes, o_bytes, o_is_f32, budget)
    if block_inter is not None:
        ti = int(block_inter)
        assert inter % ti == 0 and (ti == inter or ti % 128 == 0), "bad block_inter"
    if block_rows is not None:
        tm = max(8, (int(block_rows) // 8) * 8)
    if block_inter is not None or block_rows is not None:
        padded_rows = tm * (-(-rows // tm))
        use_acc = (inter // ti > 1) and (not o_is_f32)
    n_j = inter // ti
    n_i = padded_rows // tm

    if padded_rows != rows:
        x2d = jnp.pad(x2d, ((0, padded_rows - rows), (0, 0)))

    kernel = _make_kernel(act_fn, use_acc)
    weight_passes = 1 if ti == inter else n_i      # ti == inter -> weights fetched once
    cost = pl.CostEstimate(
        flops=6 * padded_rows * hidden * inter,
        transcendentals=padded_rows * inter,
        bytes_accessed=(padded_rows * hidden * (x_bytes + o_bytes)
                        + weight_passes * 3 * hidden * inter * w_bytes),
    )

    out = pl.pallas_call(
        kernel,
        out_shape=jax.ShapeDtypeStruct((padded_rows, hidden), o_dtype),
        grid_spec=pltpu.PrefetchScalarGridSpec(
            num_scalar_prefetch=0,
            grid=(n_i, n_j),
            in_specs=[
                pl.BlockSpec((tm, hidden), lambda i, j: (i, 0)),   # x (constant over j)
                pl.BlockSpec((hidden, ti), lambda i, j: (0, j)),   # W_gate
                pl.BlockSpec((hidden, ti), lambda i, j: (0, j)),   # W_up
                pl.BlockSpec((ti, hidden), lambda i, j: (j, 0)),   # W_down
            ],
            out_specs=pl.BlockSpec((tm, hidden), lambda i, j: (i, 0)),
            scratch_shapes=([pltpu.VMEM((tm, hidden), jnp.float32)] if use_acc else []),
        ),
        compiler_params=pltpu.CompilerParams(
            dimension_semantics=("parallel", "arbitrary"),
            vmem_limit_bytes=vmem_limit,
        ),
        cost_estimate=cost,
    )(x2d, w_gate, w_up, w_down)

    if padded_rows != rows:
        out = out[:rows]
    return out.reshape(orig_shape)


# ---------------------------------------------------------------------------
# Reference + demo
# ---------------------------------------------------------------------------
def doge_gate_mlp_ref(x, w_gate, w_up, w_down, act="silu"):
    act_fn = _ACTIVATIONS[act]
    hi = jax.lax.Precision.HIGHEST
    xf = x.astype(jnp.float32)
    g = jnp.einsum("...h,hi->...i", xf, w_gate.astype(jnp.float32), precision=hi)
    u = jnp.einsum("...h,hi->...i", xf, w_up.astype(jnp.float32), precision=hi)
    return jnp.einsum("...i,ih->...h", u * act_fn(g), w_down.astype(jnp.float32), precision=hi)


def _run_case(name, batch, seq, hidden, inter, dtype, tol, **tile_overrides):
    key = jax.random.fold_in(jax.random.PRNGKey(0), hidden * 1000 + inter)
    kx, kg, ku, kd = jax.random.split(key, 4)
    x = jax.random.normal(kx, (batch, seq, hidden), jnp.float32).astype(dtype)
    w_gate = (jax.random.normal(kg, (hidden, inter), jnp.float32) / math.sqrt(hidden)).astype(dtype)
    w_up = (jax.random.normal(ku, (hidden, inter), jnp.float32) / math.sqrt(hidden)).astype(dtype)
    w_down = (jax.random.normal(kd, (inter, hidden), jnp.float32) / math.sqrt(inter)).astype(dtype)

    out = jax.block_until_ready(
        doge_gate_mlp(x, w_gate, w_up, w_down, act="silu", **tile_overrides))
    ref = doge_gate_mlp_ref(x, w_gate, w_up, w_down, act="silu")
    assert out.shape == x.shape and out.dtype == x.dtype, name
    err = float(jnp.max(jnp.abs(out.astype(jnp.float32) - ref)))
    assert jnp.allclose(out.astype(jnp.float32), ref, atol=tol, rtol=tol), (name, err)


if __name__ == "__main__":
    # Small shapes consistent with the module: (batch, seq, hidden) activations,
    # (hidden, intermediate) gate/up and (intermediate, hidden) down weights.
    _run_case("f32-single-step", 2, 8, 32, 64, jnp.float32, 5e-3)
    _run_case("f32-aligned", 2, 8, 128, 256, jnp.float32, 2e-2)
    # Force multi-tile grids to exercise both accumulation modes.
    _run_case("f32-multi-step", 2, 8, 128, 512, jnp.float32, 3e-2,
              block_rows=8, block_inter=256)
    _run_case("bf16-multi-step", 2, 8, 128, 512, jnp.bfloat16, 1e-1,
              block_rows=8, block_inter=256)
    print("KERNEL_OK")
</pallas_src>

<mosaic_0001>
module attributes {stable_mosaic.version = 11 : i64} {
  func.func @kernel(%arg0: i32, %arg1: i32, %arg2: memref<16x32xf32, #tpu.memory_space<vmem>>, %arg3: memref<32x64xf32, #tpu.memory_space<vmem>>, %arg4: memref<32x64xf32, #tpu.memory_space<vmem>>, %arg5: memref<64x32xf32, #tpu.memory_space<vmem>>, %arg6: memref<16x32xf32, #tpu.memory_space<vmem>>) attributes {dimension_semantics = [#tpu.dimension_semantics<parallel>, #tpu.dimension_semantics<arbitrary>], iteration_bounds = array<i64: 1, 1>, scalar_prefetch = 0 : i64, scratch_operands = 0 : i64, tpu.core_type = #tpu.core_type<tc>, window_params = [{transform_indices = @transform_0, window_bounds = array<i64: 16, 32>}, {transform_indices = @transform_1, window_bounds = array<i64: 32, 64>}, {transform_indices = @transform_2, window_bounds = array<i64: 32, 64>}, {transform_indices = @transform_3, window_bounds = array<i64: 64, 32>}, {transform_indices = @transform_4, window_bounds = array<i64: 16, 32>}]} {
    %c0 = arith.constant 0 : index
    %c0_0 = arith.constant 0 : index
    %0 = vector.load %arg2[%c0, %c0_0] : memref<16x32xf32, #tpu.memory_space<vmem>>, vector<16x32xf32>
    %c0_1 = arith.constant 0 : index
    %c0_2 = arith.constant 0 : index
    %1 = vector.load %arg3[%c0_1, %c0_2] : memref<32x64xf32, #tpu.memory_space<vmem>>, vector<32x64xf32>
    %cst = arith.constant dense<0.000000e+00> : vector<16x64xf32>
    %2 = tpu.matmul %0, %1, %cst {dimension_numbers = #tpu.dot_dimension_numbers<[1], [0], [0], [1], [0, 0, 1, 1], [], []>} : vector<16x32xf32>, vector<32x64xf32>, vector<16x64xf32> -> vector<16x64xf32>
    %c0_3 = arith.constant 0 : index
    %c0_4 = arith.constant 0 : index
    %3 = vector.load %arg4[%c0_3, %c0_4] : memref<32x64xf32, #tpu.memory_space<vmem>>, vector<32x64xf32>
    %cst_5 = arith.constant dense<0.000000e+00> : vector<16x64xf32>
    %4 = tpu.matmul %0, %3, %cst_5 {dimension_numbers = #tpu.dot_dimension_numbers<[1], [0], [0], [1], [0, 0, 1, 1], [], []>} : vector<16x32xf32>, vector<32x64xf32>, vector<16x64xf32> -> vector<16x64xf32>
    %5 = arith.negf %2 : vector<16x64xf32>
    %6 = math.exp %5 : vector<16x64xf32>
    %cst_6 = arith.constant 1.000000e+00 : f32
    %7 = vector.broadcast %cst_6 : f32 to vector<16x64xf32>
    %8 = arith.addf %7, %6 : vector<16x64xf32>
    %9 = arith.divf %7, %8 : vector<16x64xf32>
    %10 = arith.mulf %2, %9 : vector<16x64xf32>
    %11 = arith.mulf %4, %10 : vector<16x64xf32>
    %c0_7 = arith.constant 0 : index
    %c0_8 = arith.constant 0 : index
    %12 = vector.load %arg5[%c0_7, %c0_8] : memref<64x32xf32, #tpu.memory_space<vmem>>, vector<64x32xf32>
    %cst_9 = arith.constant dense<0.000000e+00> : vector<16x32xf32>
    %13 = tpu.matmul %11, %12, %cst_9 {dimension_numbers = #tpu.dot_dimension_numbers<[1], [0], [0], [1], [0, 0, 1, 1], [], []>} : vector<16x64xf32>, vector<64x32xf32>, vector<16x32xf32> -> vector<16x32xf32>
    %c0_i32 = arith.constant 0 : i32
    %14 = arith.cmpi eq, %arg1, %c0_i32 : i32
    %15 = arith.extui %14 : i1 to i32
    %c0_i32_10 = arith.constant 0 : i32
    %16 = arith.cmpi ne, %15, %c0_i32_10 : i32
    scf.if %16 {
      %c0_13 = arith.constant 0 : index
      %c0_14 = arith.constant 0 : index
      %20 = vector.load %arg6[%c0_13, %c0_14] : memref<16x32xf32, #tpu.memory_space<vmem>>, vector<16x32xf32>
      tpu.vector_store %arg6[%c0_13, %c0_14], %13 {strides = array<i32>} : memref<16x32xf32, #tpu.memory_space<vmem>>, vector<16x32xf32>,
    } else {
    }
    %c0_i32_11 = arith.constant 0 : i32
    %17 = arith.cmpi ne, %arg1, %c0_i32_11 : i32
    %18 = arith.extui %17 : i1 to i32
    %c0_i32_12 = arith.constant 0 : i32
    %19 = arith.cmpi ne, %18, %c0_i32_12 : i32
    scf.if %19 {
      %c0_13 = arith.constant 0 : index
      %c0_14 = arith.constant 0 : index
      %20 = vector.load %arg6[%c0_13, %c0_14] : memref<16x32xf32, #tpu.memory_space<vmem>>, vector<16x32xf32>
      %21 = arith.addf %20, %13 : vector<16x32xf32>
      %c0_15 = arith.constant 0 : index
      %c0_16 = arith.constant 0 : index
      %22 = vector.load %arg6[%c0_15, %c0_16] : memref<16x32xf32, #tpu.memory_space<vmem>>, vector<16x32xf32>
      tpu.vector_store %arg6[%c0_15, %c0_16], %21 {strides = array<i32>} : memref<16x32xf32, #tpu.memory_space<vmem>>, vector<16x32xf32>,
    } else {
    }
    return
  }
  func.func @transform_0(%arg0: i32, %arg1: i32) -> (i32, i32) {
    %c0_i32 = arith.constant 0 : i32
    %c0_i32_0 = arith.constant 0 : i32
    return %arg0, %c0_i32 : i32, i32
  }
  func.func @transform_1(%arg0: i32, %arg1: i32) -> (i32, i32) {
    %c0_i32 = arith.constant 0 : i32
    %c0_i32_0 = arith.constant 0 : i32
    return %c0_i32, %arg1 : i32, i32
  }
  func.func @transform_2(%arg0: i32, %arg1: i32) -> (i32, i32) {
    %c0_i32 = arith.constant 0 : i32
    %c0_i32_0 = arith.constant 0 : i32
    return %c0_i32, %arg1 : i32, i32
  }
  func.func @transform_3(%arg0: i32, %arg1: i32) -> (i32, i32) {
    %c0_i32 = arith.constant 0 : i32
    %c0_i32_0 = arith.constant 0 : i32
    return %arg1, %c0_i32 : i32, i32
  }
  func.func @transform_4(%arg0: i32, %arg1: i32) -> (i32, i32) {
    %c0_i32 = arith.constant 0 : i32
    %c0_i32_0 = arith.constant 0 : i32
    return %arg0, %c0_i32 : i32, i32
  }
}

</mosaic_0001>

<llo_original>
// kernel: tpu_custom_call.1
$region0: #{tpu_custom_call.1}
  #allocation0 [shape = 'u32[]', space=smem, size = 0x4, offset = 0x4, fixed_abs, tag = 'smem constant byte address 0x4 - core index']
  #allocation1 [shape = 'u32[144,128]{1,0:T(1,128)}', space=vmem, size = 0x12000, scoped, tag = 'internal scratch']
  %s0 = inlined_call_operand.vmem [shape: f32[16,32], index: 0, kind: input, shape index: {}]
  %s1 = inlined_call_operand.vmem [shape: f32[32,64], index: 1, kind: input, shape index: {}]
  %s2 = inlined_call_operand.vmem [shape: f32[32,64], index: 2, kind: input, shape index: {}]
  %s3 = inlined_call_operand.vmem [shape: f32[64,32], index: 3, kind: input, shape index: {}]
  %s4 = inlined_call_operand.hbm [shape: f32[16,32], index: 4, kind: output, shape index: {}]
  %s5 = sld [smem:[#allocation0]]
  $region34: #{tpu_custom_call.1} parent=0
    _
  %s7 = ssub.s32 1, %s5
  %s8 = scalar_select 0, %s7, %s5
  $region1: #{tpu_custom_call.1} parent=0
    #allocation2 [shape = 'u8[8192]{0}', space=vmem, size = 0x2000, scoped, tag = 'output window, operand 0, single buffered']
    #allocation3 [shape = 's32[1]{0}', space=sflag, size = 0x4, scoped, tag = 'scoped memory for tpu_custom_call.1']
    %9 = vsyncpa [#allocation3], 0
    // Predicated region
    $region2: #{tpu_custom_call.1} parent=1 // pred_check
      _
    $region3: #{tpu_custom_call.1} parent=1 // pred_check_branch
      %11 = sbr.rel (0) target = $region5
    $region4: #{tpu_custom_call.1} parent=1 // pred_region
      _
    $region5: #{tpu_custom_call.1} parent=1 // pred_fallthru
      _
    // Predicated region
    $region6: #{tpu_custom_call.1} parent=1 // pred_check
      _
    $region7: #{tpu_custom_call.1} parent=1 // pred_check_branch
      %13 = sbr.rel (0) target = $region9
    $region8: #{tpu_custom_call.1} parent=1 // pred_region
      _
    $region9: #{tpu_custom_call.1} parent=1 // pred_fallthru
      _
    // Predicated region
    $region10: #{tpu_custom_call.1} parent=1 // pred_check
      _
    $region11: #{tpu_custom_call.1} parent=1 // pred_check_branch
      %15 = sbr.rel (0) target = $region13
    $region12: #{tpu_custom_call.1} parent=1 // pred_region
      _
    $region13: #{tpu_custom_call.1} parent=1 // pred_fallthru
      _
    // Predicated region
    $region14: #{tpu_custom_call.1} parent=1 // pred_check
      _
    $region15: #{tpu_custom_call.1} parent=1 // pred_check_branch
      %17 = sbr.rel (0) target = $region17
    $region16: #{tpu_custom_call.1} parent=1 // pred_region
      _
    $region17: #{tpu_custom_call.1} parent=1 // pred_fallthru
      _
    %v18 = vld [vmem:[%s0] sm:$0xff]
    %v19 = vld [vmem:[%s0 + $0x8] sm:$0xff]
    %v20 = vld [vmem:[%s1] sm:$0xff]
    %v21 = vld [vmem:[%s1 + $0x8] sm:$0xff]
    %v22 = vld [vmem:[%s1 + $0x10] sm:$0xff]
    %v23 = vld [vmem:[%s1 + $0x18] sm:$0xff]
    %vm24 = vcmask 261120
    %v26 = vsel %vm24, %v18, 0
    %v29 = vsel %vm24, %v19, 0
    %31 = vmatprep.subr.mxu0 0.0
    %32 = vmatpush1.msra.mxu0 %v20
    %33 = vmatprep.subr.mxu0 0.0
    %34 = vmatpush1.msra.mxu0 %v21
    %35 = vmatprep.subr.mxu0 0.0
    %36 = vmatpush1.msra.mxu0 %v22
    %37 = vmatprep.subr.mxu0 0.0
    %38 = vmatpush1.msra.mxu0 %v23
    %39 = vmatprep.subr.mxu0 0.0
    %40 = vmatpush1.msra.mxu0 0.0
    %41 = vmatprep.subr.mxu0 0.0
    %42 = vmatpush1.msra.mxu0 0.0
    %43 = vmatprep.subr.mxu0 0.0
    %44 = vmatpush1.msra.mxu0 0.0
    %45 = vmatprep.subr.mxu0 0.0
    %46 = vmatpush1.msra.mxu0 0.0
    %47 = vmatprep.subr.mxu0 0.0
    %48 = vmatpush1.msra.mxu0 0.0
    %49 = vmatprep.subr.mxu0 0.0
    %50 = vmatpush1.msra.mxu0 0.0
    %51 = vmatprep.subr.mxu0 0.0
    %52 = vmatpush1.msra.mxu0 0.0
    %53 = vmatprep.subr.mxu0 0.0
    %54 = vmatpush1.msra.mxu0 0.0
    %55 = vmatprep.subr.mxu0 0.0
    %56 = vmatpush1.msra.mxu0 0.0
    %57 = vmatprep.subr.mxu0 0.0
    %58 = vmatpush1.msra.mxu0 0.0
    %59 = vmatprep.subr.mxu0 0.0
    %60 = vmatpush1.msra.mxu0 0.0
    %61 = vmatprep.subr.mxu0 0.0
    %62 = vmatpush1.msra.mxu0 0.0
    %63 = vmatprep.subr.mxu0 0.0
    %64 = vmatpush1.msra.mxu0 0.0
    %65 = vmatprep.subr.mxu0 0.0
    %66 = vmatpush1.msra.mxu0 0.0
    %67 = vmatprep.subr.mxu0 0.0
    %68 = vmatpush1.msra.mxu0 0.0
    %69 = vmatprep.subr.mxu0 0.0
    %70 = vmatpush1.msra.mxu0 0.0
    %71 = vmatprep.subr.mxu0 0.0
    %72 = vmatpush1.msra.mxu0 0.0
    %73 = vmatprep.subr.mxu0 0.0
    %74 = vmatpush1.msra.mxu0 0.0
    %75 = vmatprep.subr.mxu0 0.0
    %76 = vmatpush1.msra.mxu0 0.0
    %77 = vmatprep.subr.mxu0 0.0
    %78 = vmatpush1.msra.mxu0 0.0
    %79 = vmatprep.subr.mxu0 0.0
    %80 = vmatpush1.msra.mxu0 0.0
    %81 = vmatprep.subr.mxu0 0.0
    %82 = vmatpush1.msra.mxu0 0.0
    %83 = vmatprep.subr.mxu0 0.0
    %84 = vmatpush1.msra.mxu0 0.0
    %85 = vmatprep.subr.mxu0 0.0
    %86 = vmatpush1.msra.mxu0 0.0
    %87 = vmatprep.subr.mxu0 0.0
    %88 = vmatpush1.msra.mxu0 0.0
    %89 = vmatprep.subr.mxu0 0.0
    %90 = vmatpush1.msra.mxu0 0.0
    %91 = vmatprep.subr.mxu0 0.0
    %92 = vmatpush1.msra.mxu0 0.0
    %93 = vmatprep.subr.mxu0 0.0
    %94 = vmatpush1.msra.mxu0 0.0
    %95 = vmatprep.mubr.f32.mxu0 0.0
    %96 = vmatmul.mubr.f32.gmra.mrb[0].mxu0 %v26
    %v97 = vpop.f32.mrb[0].mxu0
    %v98 = vadd.f32 0.0, %v97
    %v99 = vpop.f32.mrb[0].mxu0
    %100 = vmatprep.mubr.f32.mxu0 0.0
    %101 = vmatmul.mubr.f32.gmra.mrb[0].mxu0 %v29
    %v102 = vpop.f32.mrb[0].mxu0
    %v103 = vadd.f32 0.0, %v102
    %v104 = vpop.f32.mrb[0].mxu0
    %105 = vdwg.mxu0
    %v106 = vld [vmem:[%s2] sm:$0xff]
    %v107 = vld [vmem:[%s2 + $0x8] sm:$0xff]
    %v108 = vld [vmem:[%s2 + $0x10] sm:$0xff]
    %v109 = vld [vmem:[%s2 + $0x18] sm:$0xff]
    %110 = vmatprep.subr.mxu0 0.0
    %111 = vmatpush1.msra.mxu0 %v106
    %112 = vmatprep.subr.mxu0 0.0
    %113 = vmatpush1.msra.mxu0 %v107
    %114 = vmatprep.subr.mxu0 0.0
    %115 = vmatpush1.msra.mxu0 %v108
    %116 = vmatprep.subr.mxu0 0.0
    %117 = vmatpush1.msra.mxu0 %v109
    %118 = vmatprep.subr.mxu0 0.0
    %119 = vmatpush1.msra.mxu0 0.0
    %120 = vmatprep.subr.mxu0 0.0
    %121 = vmatpush1.msra.mxu0 0.0
    %122 = vmatprep.subr.mxu0 0.0
    %123 = vmatpush1.msra.mxu0 0.0
    %124 = vmatprep.subr.mxu0 0.0
    %125 = vmatpush1.msra.mxu0 0.0
    %126 = vmatprep.subr.mxu0 0.0
    %127 = vmatpush1.msra.mxu0 0.0
    %128 = vmatprep.subr.mxu0 0.0
    %129 = vmatpush1.msra.mxu0 0.0
    %130 = vmatprep.subr.mxu0 0.0
    %131 = vmatpush1.msra.mxu0 0.0
    %132 = vmatprep.subr.mxu0 0.0
    %133 = vmatpush1.msra.mxu0 0.0
    %134 = vmatprep.subr.mxu0 0.0
    %135 = vmatpush1.msra.mxu0 0.0
    %136 = vmatprep.subr.mxu0 0.0
    %137 = vmatpush1.msra.mxu0 0.0
    %138 = vmatprep.subr.mxu0 0.0
    %139 = vmatpush1.msra.mxu0 0.0
    %140 = vmatprep.subr.mxu0 0.0
    %141 = vmatpush1.msra.mxu0 0.0
    %142 = vmatprep.subr.mxu0 0.0
    %143 = vmatpush1.msra.mxu0 0.0
    %144 = vmatprep.subr.mxu0 0.0
    %145 = vmatpush1.msra.mxu0 0.0
    %146 = vmatprep.subr.mxu0 0.0
    %147 = vmatpush1.msra.mxu0 0.0
    %148 = vmatprep.subr.mxu0 0.0
    %149 = vmatpush1.msra.mxu0 0.0
    %150 = vmatprep.subr.mxu0 0.0
    %151 = vmatpush1.msra.mxu0 0.0
    %152 = vmatprep.subr.mxu0 0.0
    %153 = vmatpush1.msra.mxu0 0.0
    %154 = vmatprep.subr.mxu0 0.0
    %155 = vmatpush1.msra.mxu0 0.0
    %156 = vmatprep.subr.mxu0 0.0
    %157 = vmatpush1.msra.mxu0 0.0
    %158 = vmatprep.subr.mxu0 0.0
    %159 = vmatpush1.msra.mxu0 0.0
    %160 = vmatprep.subr.mxu0 0.0
    %161 = vmatpush1.msra.mxu0 0.0
    %162 = vmatprep.subr.mxu0 0.0
    %163 = vmatpush1.msra.mxu0 0.0
    %164 = vmatprep.subr.mxu0 0.0
    %165 = vmatpush1.msra.mxu0 0.0
    %166 = vmatprep.subr.mxu0 0.0
    %167 = vmatpush1.msra.mxu0 0.0
    %168 = vmatprep.subr.mxu0 0.0
    %169 = vmatpush1.msra.mxu0 0.0
    %170 = vmatprep.subr.mxu0 0.0
    %171 = vmatpush1.msra.mxu0 0.0
    %172 = vmatprep.subr.mxu0 0.0
    %173 = vmatpush1.msra.mxu0 0.0
    %174 = vmatprep.mubr.f32.mxu0 0.0
    %175 = vmatmul.mubr.f32.gmra.mrb[0].mxu0 %v26
    %v176 = vpop.f32.mrb[0].mxu0
    %v177 = vadd.f32 0.0, %v176
    %v178 = vpop.f32.mrb[0].mxu0
    %179 = vmatprep.mubr.f32.mxu0 0.0
    %180 = vmatmul.mubr.f32.gmra.mrb[0].mxu0 %v29
    %v181 = vpop.f32.mrb[0].mxu0
    %v182 = vadd.f32 0.0, %v181
    %v183 = vpop.f32.mrb[0].mxu0
    %184 = vdwg.mxu0
    %v185 = vxor.u32 %v98, 2147483648
    %v186 = vxor.u32 %v103, 2147483648
    %v187 = vmul.f32 %v185, 1.442695
    %v188 = vpow.pop %v187
    %v189 = vmul.f32 %v186, 1.442695
    %v190 = vpow.pop %v189
    %v191 = vadd.f32 %v188, 1.0
    %v192 = vadd.f32 %v190, 1.0
    %v193 = vrcp.pop %v191
    %v194 = vmul.f32 1.0, %v193
    %v195 = vrcp.pop %v192
    %v196 = vmul.f32 1.0, %v195
    %v197 = vmul.f32 %v98, %v194
    %v198 = vmul.f32 %v103, %v196
    %v199 = vmul.f32 %v177, %v197
    %v200 = vmul.f32 %v182, %v198
    %v201 = vld [vmem:[%s3] sm:$0xff]
    %v202 = vld [vmem:[%s3 + $0x8] sm:$0xff]
    %v203 = vld [vmem:[%s3 + $0x10] sm:$0xff]
    %v204 = vld [vmem:[%s3 + $0x18] sm:$0xff]
    %v205 = vld [vmem:[%s3 + $0x20] sm:$0xff]
    %v206 = vld [vmem:[%s3 + $0x28] sm:$0xff]
    %v207 = vld [vmem:[%s3 + $0x30] sm:$0xff]
    %v208 = vld [vmem:[%s3 + $0x38] sm:$0xff]
    %vm209 = vcmask 523264
    %v211 = vsel %vm209, %v199, 0
    %v214 = vsel %vm209, %v200, 0
    %216 = vmatprep.subr.mxu0 0.0
    %217 = vmatpush1.msra.mxu0 %v201
    %218 = vmatprep.subr.mxu0 0.0
    %219 = vmatpush1.msra.mxu0 %v202
    %220 = vmatprep.subr.mxu0 0.0
    %221 = vmatpush1.msra.mxu0 %v203
    %222 = vmatprep.subr.mxu0 0.0
    %223 = vmatpush1.msra.mxu0 %v204
    %224 = vmatprep.subr.mxu0 0.0
    %225 = vmatpush1.msra.mxu0 %v205
    %226 = vmatprep.subr.mxu0 0.0
    %227 = vmatpush1.msra.mxu0 %v206
    %228 = vmatprep.subr.mxu0 0.0
    %229 = vmatpush1.msra.mxu0 %v207
    %230 = vmatprep.subr.mxu0 0.0
    %231 = vmatpush1.msra.mxu0 %v208
    %232 = vmatprep.subr.mxu0 0.0
    %233 = vmatpush1.msra.mxu0 0.0
    %234 = vmatprep.subr.mxu0 0.0
    %235 = vmatpush1.msra.mxu0 0.0
    %236 = vmatprep.subr.mxu0 0.0
    %237 = vmatpush1.msra.mxu0 0.0
    %238 = vmatprep.subr.mxu0 0.0
    %239 = vmatpush1.msra.mxu0 0.0
    %240 = vmatprep.subr.mxu0 0.0
    %241 = vmatpush1.msra.mxu0 0.0
    %242 = vmatprep.subr.mxu0 0.0
    %243 = vmatpush1.msra.mxu0 0.0
    %244 = vmatprep.subr.mxu0 0.0
    %245 = vmatpush1.msra.mxu0 0.0
    %246 = vmatprep.subr.mxu0 0.0
    %247 = vmatpush1.msra.mxu0 0.0
    %248 = vmatprep.subr.mxu0 0.0
    %249 = vmatpush1.msra.mxu0 0.0
    %250 = vmatprep.subr.mxu0 0.0
    %251 = vmatpush1.msra.mxu0 0.0
    %252 = vmatprep.subr.mxu0 0.0
    %253 = vmatpush1.msra.mxu0 0.0
    %254 = vmatprep.subr.mxu0 0.0
    %255 = vmatpush1.msra.mxu0 0.0
    %256 = vmatprep.subr.mxu0 0.0
    %257 = vmatpush1.msra.mxu0 0.0
    %258 = vmatprep.subr.mxu0 0.0
    %259 = vmatpush1.msra.mxu0 0.0
    %260 = vmatprep.subr.mxu0 0.0
    %261 = vmatpush1.msra.mxu0 0.0
    %262 = vmatprep.subr.mxu0 0.0
    %263 = vmatpush1.msra.mxu0 0.0
    %264 = vmatprep.subr.mxu0 0.0
    %265 = vmatpush1.msra.mxu0 0.0
    %266 = vmatprep.subr.mxu0 0.0
    %267 = vmatpush1.msra.mxu0 0.0
    %268 = vmatprep.subr.mxu0 0.0
    %269 = vmatpush1.msra.mxu0 0.0
    %270 = vmatprep.subr.mxu0 0.0
    %271 = vmatpush1.msra.mxu0 0.0
    %272 = vmatprep.subr.mxu0 0.0
    %273 = vmatpush1.msra.mxu0 0.0
    %274 = vmatprep.subr.mxu0 0.0
    %275 = vmatpush1.msra.mxu0 0.0
    %276 = vmatprep.subr.mxu0 0.0
    %277 = vmatpush1.msra.mxu0 0.0
    %278 = vmatprep.subr.mxu0 0.0
    %279 = vmatpush1.msra.mxu0 0.0
    %280 = vmatprep.mubr.f32.mxu0 0.0
    %281 = vmatmul.mubr.f32.gmra.mrb[0].mxu0 %v211
    %v282 = vpop.f32.mrb[0].mxu0
    %v283 = vadd.f32 0.0, %v282
    %v284 = vpop.f32.mrb[0].mxu0
    %285 = vmatprep.mubr.f32.mxu0 0.0
    %286 = vmatmul.mubr.f32.gmra.mrb[0].mxu0 %v214
    %v287 = vpop.f32.mrb[0].mxu0
    %v288 = vadd.f32 0.0, %v287
    %v289 = vpop.f32.mrb[0].mxu0
    %290 = vdwg.mxu0
    %p291 = scmp.eq.s32.totalorder 0, 0
    // Predicated region
    $region18: #{tpu_custom_call.1} parent=1 // pred_check
      %p292 = pneg %p291
    $region19: #{tpu_custom_call.1} parent=1 // pred_check_branch
      %294 = sbr.rel (%p292) target = $region21
    $region20: #{tpu_custom_call.1} parent=1 // pred_region
      %295 = vst.msk [vmem:[#allocation2] sm:$0xff] %vm24, %v283
      %296 = vst.msk [vmem:[#allocation2 + $0x8] sm:$0xff] %vm24, %v288
    $region21: #{tpu_custom_call.1} parent=1 // pred_fallthru
      _
    %p297 = scmp.ne.s32.totalorder 0, 0
    // Predicated region
    $region22: #{tpu_custom_call.1} parent=1 // pred_check
      %p298 = pneg %p297
    $region23: #{tpu_custom_call.1} parent=1 // pred_check_branch
      %300 = sbr.rel (%p298) target = $region25
    $region24: #{tpu_custom_call.1} parent=1 // pred_region
      %v301 = vld [vmem:[#allocation2] sm:$0xff]
      %v302 = vld [vmem:[#allocation2 + $0x8] sm:$0xff]
      %v303 = vadd.f32 %v301, %v283
      %v304 = vadd.f32 %v302, %v288
      %305 = vst.msk [vmem:[#allocation2] sm:$0xff] %vm24, %v303
      %306 = vst.msk [vmem:[#allocation2 + $0x8] sm:$0xff] %vm24, %v304
    $region25: #{tpu_custom_call.1} parent=1 // pred_fallthru
      _
    // Predicated region
    $region26: #{tpu_custom_call.1} parent=1 // pred_check
      _
    $region27: #{tpu_custom_call.1} parent=1 // pred_check_branch
      %308 = sbr.rel (0) target = $region29
    $region28: #{tpu_custom_call.1} parent=1 // pred_region
      %s310 = ssub.s32 256, 256
      %311 = vsyncadd [#allocation3], %s310
      %s312 = sshll.u32 [#allocation2], 4
      %s313 = int_to_ptr.vmem [resolvable:$true] %s312
      %318 = dma.vmem_to_hbm [thread:$0]  %s313, 256, %s4, [#allocation3], 128, 128, 8
    $region29: #{tpu_custom_call.1} parent=1 // pred_fallthru
      _
    // Predicated region
    $region30: #{tpu_custom_call.1} parent=1 // pred_check
      _
    $region31: #{tpu_custom_call.1} parent=1 // pred_check_branch
      %320 = sbr.rel (0) target = $region33
    $region32: #{tpu_custom_call.1} parent=1 // pred_region
      %321 = dma.done [#allocation3], 256
    $region33: #{tpu_custom_call.1} parent=1 // pred_fallthru
      _
    %322 = vsyncpa [#allocation3], 1

</llo_original>
